<compile_context>
chip_gen: v6e
topology: v6e:2x2x1
jax: 0.10.0
libtpu: 0.0.40
codegen_flags: <defaults>
</compile_context>

<pallas_src>
import functools

import jax
import jax.numpy as jnp
from jax.experimental import pallas as pl
from jax.experimental.pallas import tpu as pltpu

_LANES = 128


def _round_up(n, m):
    return -(-n // m) * m


def pack_slab(entries, lanes=_LANES):
    """Lane-dense packing of 2-D f32 arrays into one (R, lanes) slab.

    Multi-row entries are shelf-packed: entries sharing a shelf sit side-by-side
    along the lane axis (column offsets 8-aligned).  All single-row entries
    (biases, e_sq) are coalesced into shared 8-row blocks, one per sublane row.
    Returns (slab, off) with off[name] = (row, col, nrows, ncols); every kernel
    carve-out is a static slice.
    """
    mats, vecs = [], []
    for name, a in entries:
        a = jnp.asarray(a, jnp.float32)
        assert a.ndim == 2 and a.shape[1] <= lanes, (name, a.shape)
        (mats if a.shape[0] > 1 else vecs).append((name, a))

    shelves = []  # {"h": rows, "used": lanes used, "items": [(name, col, arr)]}
    for name, a in sorted(mats, key=lambda kv: (-kv[1].shape[0], -kv[1].shape[1])):
        nr, nc = a.shape
        for sh in shelves:
            col = _round_up(sh["used"], 8)
            if nr <= sh["h"] and col + nc <= lanes:
                sh["items"].append((name, col, a))
                sh["used"] = col + nc
                break
        else:
            shelves.append({"h": _round_up(nr, 8), "used": nc,
                            "items": [(name, 0, a)]})

    off, blocks, row = {}, [], 0
    for sh in shelves:
        blk = jnp.zeros((sh["h"], lanes), jnp.float32)
        for name, col, a in sh["items"]:
            nr, nc = a.shape
            blk = blk.at[:nr, col:col + nc].set(a)
            off[name] = (row, col, nr, nc)
        blocks.append(blk)
        row += sh["h"]

    for i in range(0, len(vecs), 8):
        group = vecs[i:i + 8]
        blk = jnp.zeros((8, lanes), jnp.float32)
        for j, (name, a) in enumerate(group):
            nc = int(a.shape[1])
            blk = blk.at[j, :nc].set(a[0])
            off[name] = (row + j, 0, 1, nc)
        blocks.append(blk)
        row += 8

    return jnp.concatenate(blocks, axis=0), off


def prepare_params(params):
    """One-time parameter preparation (hoisted out of the per-call path)."""
    emb = params["emb"].astype(jnp.float32)
    hidden_dim = int(params["w1"].shape[1])
    output_dim = int(params["wm"].shape[1])
    headn = max(128, _round_up(2 * output_dim, 128))   # lane-dense fused head

    wh = jnp.zeros((hidden_dim, headn), jnp.float32)
    wh = wh.at[:, :output_dim].set(params["wm"])
    wh = wh.at[:, output_dim:2 * output_dim].set(params["wlv"])
    bh = jnp.zeros((1, headn), jnp.float32)
    bh = bh.at[:, :output_dim].set(params["bm"])
    bh = bh.at[:, output_dim:2 * output_dim].set(params["blv"])

    entries = [
        ("w1", params["w1"]), ("w2", params["w2"]),
        ("embT", emb.T), ("emb", emb),
        ("w3", params["w3"]), ("w4", params["w4"]),
        ("wh", wh),
        ("b1", params["b1"]), ("b2", params["b2"]),
        ("b3", params["b3"]), ("b4", params["b4"]),
        ("bh", bh),
        ("e_sq", jnp.sum(emb * emb, axis=1)[None, :]),
    ]
    slab, off = pack_slab(entries)
    dims = dict(
        x_dim=int(params["w1"].shape[0]),
        hidden_dim=hidden_dim,
        codebook_dim=int(emb.shape[1]),
        codebook_size=int(emb.shape[0]),
        output_dim=output_dim,
        headn=headn,
    )
    return slab, off, dims


def _pref_emb_kernel(x_ref, slab_ref, ml_ref, loss_ref, *, off, batch, tb, mse_scale):
    def get(name):
        r, c, nr, nc = off[name]          # static Python ints -> free slices
        return slab_ref[r:r + nr, c:c + nc]

    x = x_ref[...]

    # ---- self.vq: Linear -> Tanh -> Linear ----
    h = jnp.tanh(jnp.dot(x, get("w1"), preferred_element_type=jnp.float32) + get("b1"))
    z = jnp.dot(h, get("w2"), preferred_element_type=jnp.float32) + get("b2")   # (tb, D)

    # ---- nearest codebook entry ----
    # argmin_k(||z||^2 + ||e_k||^2 - 2 z.e_k) == argmin_k(||e_k||^2 - 2 z.e_k)
    cross = jnp.dot(z, get("embT"), preferred_element_type=jnp.float32)         # (tb, K)
    scores = get("e_sq") - 2.0 * cross                                          # (tb, K)
    K = scores.shape[1]
    col = jax.lax.broadcasted_iota(jnp.int32, scores.shape, 1)
    smin = jnp.min(scores, axis=1, keepdims=True)
    idx = jnp.min(jnp.where(scores == smin, col, K), axis=1, keepdims=True)     # (tb, 1)

    # gather codebook rows via one-hot matmul (MXU-friendly, no dynamic gather)
    onehot = (col == idx).astype(jnp.float32)                                   # (tb, K)
    x_q = jnp.dot(onehot, get("emb"), preferred_element_type=jnp.float32)       # (tb, D)

    # ---- vq_loss + commitment_loss (commitment_cost = 1.0) partial sum ----
    diff = x_q - z
    sq = diff * diff
    if batch % tb != 0:                      # static: mask padded rows of last block
        rows = jax.lax.broadcasted_iota(jnp.int32, sq.shape, 0)
        sq = jnp.where(pl.program_id(0) * tb + rows < batch, sq, 0.0)
    partial = jnp.sum(sq) * mse_scale
    loss_ref[...] = jnp.broadcast_to(partial, loss_ref.shape)   # lane-dense tile store

    # ---- straight-through forward value x_q -> TaskEmbedding MLP ----
    # TODO(synk): straight-through / stop-gradient only affect the backward pass;
    # training through this kernel would require a custom_vjp.
    h1 = jnp.tanh(jnp.dot(x_q, get("w3"), preferred_element_type=jnp.float32) + get("b3"))
    h2 = jnp.tanh(jnp.dot(h1, get("w4"), preferred_element_type=jnp.float32) + get("b4"))
    # fused mean|log_var head, zero-padded to 128 lanes: one matmul, one dense store
    ml_ref[...] = jnp.dot(h2, get("wh"), preferred_element_type=jnp.float32) + get("bh")


def build_forward(off, dims, batch, slab_shape, *, tb=None):
    """Returns a jitted forward(x, slab) -> (mean, log_var, loss)."""
    x_dim = dims["x_dim"]
    hd, cd = dims["hidden_dim"], dims["codebook_dim"]
    K, headn, out_dim = dims["codebook_size"], dims["headn"], dims["output_dim"]

    if tb is None:
        tb = min(_round_up(batch, 8), 512)   # v5e: prefer multiples of 128 at scale
    tb = _round_up(tb, 8)
    num_blocks = pl.cdiv(batch, tb)
    mse_scale = 2.0 / float(batch * cd)      # vq_loss + commitment_loss, cost = 1.0

    kernel = functools.partial(_pref_emb_kernel, off=off, batch=batch, tb=tb,
                               mse_scale=mse_scale)

    flops = 2 * batch * (x_dim * hd + hd * cd + cd * K + K * cd + cd * hd
                         + hd * hd + hd * headn)
    cost = pl.CostEstimate(
        flops=flops,
        transcendentals=3 * batch * hd,
        bytes_accessed=4 * (batch * x_dim + slab_shape[0] * slab_shape[1]
                            + batch * headn + num_blocks * 8 * 128),
    )

    call = pl.pallas_call(
        kernel,
        grid=(num_blocks,),
        in_specs=[
            pl.BlockSpec((tb, x_dim), lambda i: (i, 0)),
            pl.BlockSpec(tuple(slab_shape), lambda i: (0, 0)),  # resident weights
        ],
        out_specs=(
            pl.BlockSpec((tb, headn), lambda i: (i, 0)),        # lane-dense ml store
            pl.BlockSpec((8, 128), lambda i: (i, 0)),           # per-block loss tile
        ),
        out_shape=(
            jax.ShapeDtypeStruct((batch, headn), jnp.float32),
            jax.ShapeDtypeStruct((num_blocks * 8, 128), jnp.float32),
        ),
        compiler_params=pltpu.CompilerParams(
            dimension_semantics=("parallel",),
            vmem_limit_bytes=32 * 1024 * 1024,
        ),
        cost_estimate=cost,
    )

    @jax.jit
    def forward(x, slab):
        ml, loss_blocks = call(x, slab)
        loss = jnp.sum(loss_blocks[::8, 0])
        return ml[:, :out_dim], ml[:, out_dim:2 * out_dim], loss

    return forward


def init_params(key, x_dim, codebook_size, codebook_dim, hidden_dim, output_dim):
    """Deterministic synthetic init. Weights stored as (in, out); biases as (1, out)."""
    keys = jax.random.split(key, 16)

    def linear(kw, kb, fan_in, fan_out):
        bound = 1.0 / jnp.sqrt(fan_in)
        w = jax.random.uniform(kw, (fan_in, fan_out), jnp.float32, -bound, bound)
        b = jax.random.uniform(kb, (1, fan_out), jnp.float32, -bound, bound)
        return w, b

    w1, b1 = linear(keys[0], keys[1], x_dim, hidden_dim)
    w2, b2 = linear(keys[2], keys[3], hidden_dim, codebook_dim)
    w3, b3 = linear(keys[4], keys[5], codebook_dim, hidden_dim)
    w4, b4 = linear(keys[6], keys[7], hidden_dim, hidden_dim)
    wm, bm = linear(keys[8], keys[9], hidden_dim, output_dim)
    wlv, blv = linear(keys[10], keys[11], hidden_dim, output_dim)
    emb = jax.random.uniform(
        keys[12], (codebook_size, codebook_dim), jnp.float32,
        -1.0 / codebook_size, 1.0 / codebook_size,
    )
    return dict(w1=w1, b1=b1, w2=w2, b2=b2, emb=emb,
                w3=w3, b3=b3, w4=w4, b4=b4,
                wm=wm, bm=bm, wlv=wlv, blv=blv)


def reference_forward(x, p):
    """Pure-JAX reference mirroring the PyTorch forward (values only)."""
    h = jnp.tanh(x @ p["w1"] + p["b1"])
    z = h @ p["w2"] + p["b2"]
    d = (jnp.sum(z * z, axis=1, keepdims=True)
         + jnp.sum(p["emb"] ** 2, axis=1)[None, :]
         - 2.0 * z @ p["emb"].T)
    idx = jnp.argmin(d, axis=1)
    x_q = p["emb"][idx]
    loss = 2.0 * jnp.mean((x_q - z) ** 2)
    h1 = jnp.tanh(x_q @ p["w3"] + p["b3"])
    h2 = jnp.tanh(h1 @ p["w4"] + p["b4"])
    return h2 @ p["wm"] + p["bm"], h2 @ p["wlv"] + p["blv"], loss


if __name__ == "__main__":
    # Small, module-consistent shapes.
    B, x_dim = 8, 16
    codebook_size, codebook_dim = 32, 16
    hidden_dim, output_dim = 32, 8

    key = jax.random.PRNGKey(0)
    k_x, k_p = jax.random.split(key)
    x = jax.random.normal(k_x, (B, x_dim), jnp.float32)
    params = init_params(k_p, x_dim, codebook_size, codebook_dim, hidden_dim, output_dim)

    # One-time preparation (hoisted out of the per-call path).
    slab, off, dims = prepare_params(params)
    slab = jax.block_until_ready(slab)
    forward = build_forward(off, dims, batch=B, slab_shape=slab.shape)

    mean, log_var, loss = forward(x, slab)
    jax.block_until_ready((mean, log_var, loss))

    # Correctness check against a pure-JAX reference.
    mean_r, logvar_r, loss_r = reference_forward(x, params)
    assert jnp.allclose(mean, mean_r, atol=1e-5, rtol=1e-5)
    assert jnp.allclose(log_var, logvar_r, atol=1e-5, rtol=1e-5)
    assert jnp.allclose(loss, loss_r, atol=1e-5, rtol=1e-5)

    print("KERNEL_OK")
</pallas_src>

<mosaic_0001>
module attributes {stable_mosaic.version = 11 : i64} {
  func.func @_pref_emb_kernel(%arg0: i32, %arg1: memref<8x16xf32, #tpu.memory_space<vmem>>, %arg2: memref<88x128xf32, #tpu.memory_space<vmem>>, %arg3: memref<8x128xf32, #tpu.memory_space<vmem>>, %arg4: memref<8x128xf32, #tpu.memory_space<vmem>>) attributes {dimension_semantics = [#tpu.dimension_semantics<parallel>], iteration_bounds = array<i64: 1>, scalar_prefetch = 0 : i64, scratch_operands = 0 : i64, tpu.core_type = #tpu.core_type<tc>, window_params = [{transform_indices = @transform_0, window_bounds = array<i64: 8, 16>}, {pipeline_mode = #tpu.pipeline_mode<synchronous>, transform_indices = @transform_1, window_bounds = array<i64: 88, 128>}, {transform_indices = @transform_2, window_bounds = array<i64: 8, 128>}, {transform_indices = @transform_3, window_bounds = array<i64: 8, 128>}]} {
    %c0 = arith.constant 0 : index
    %c0_0 = arith.constant 0 : index
    %0 = vector.load %arg1[%c0, %c0_0] : memref<8x16xf32, #tpu.memory_space<vmem>>, vector<8x16xf32>
    %c32 = arith.constant 32 : index
    %c64 = arith.constant 64 : index
    %1 = vector.load %arg2[%c32, %c64] : memref<88x128xf32, #tpu.memory_space<vmem>>, vector<16x32xf32>
    %cst = arith.constant dense<0.000000e+00> : vector<8x32xf32>
    %2 = tpu.matmul %0, %1, %cst {dimension_numbers = #tpu.dot_dimension_numbers<[1], [0], [0], [1], [0, 0, 1, 1], [], []>} : vector<8x16xf32>, vector<16x32xf32>, vector<8x32xf32> -> vector<8x32xf32>
    %c80 = arith.constant 80 : index
    %c0_1 = arith.constant 0 : index
    %3 = vector.load %arg2[%c80, %c0_1] : memref<88x128xf32, #tpu.memory_space<vmem>>, vector<1x32xf32>
    %4 = vector.broadcast %3 : vector<1x32xf32> to vector<8x32xf32>
    %5 = arith.addf %2, %4 : vector<8x32xf32>
    %6 = math.tanh %5 : vector<8x32xf32>
    %c32_2 = arith.constant 32 : index
    %c32_3 = arith.constant 32 : index
    %7 = vector.load %arg2[%c32_2, %c32_3] : memref<88x128xf32, #tpu.memory_space<vmem>>, vector<32x16xf32>
    %cst_4 = arith.constant dense<0.000000e+00> : vector<8x16xf32>
    %8 = tpu.matmul %6, %7, %cst_4 {dimension_numbers = #tpu.dot_dimension_numbers<[1], [0], [0], [1], [0, 0, 1, 1], [], []>} : vector<8x32xf32>, vector<32x16xf32>, vector<8x16xf32> -> vector<8x16xf32>
    %c81 = arith.constant 81 : index
    %c0_5 = arith.constant 0 : index
    %9 = vector.load %arg2[%c81, %c0_5] : memref<88x128xf32, #tpu.memory_space<vmem>>, vector<1x16xf32>
    %10 = vector.broadcast %9 : vector<1x16xf32> to vector<8x16xf32>
    %11 = arith.addf %8, %10 : vector<8x16xf32>
    %c32_6 = arith.constant 32 : index
    %c96 = arith.constant 96 : index
    %12 = vector.load %arg2[%c32_6, %c96] : memref<88x128xf32, #tpu.memory_space<vmem>>, vector<16x32xf32>
    %cst_7 = arith.constant dense<0.000000e+00> : vector<8x32xf32>
    %13 = tpu.matmul %11, %12, %cst_7 {dimension_numbers = #tpu.dot_dimension_numbers<[1], [0], [0], [1], [0, 0, 1, 1], [], []>} : vector<8x16xf32>, vector<16x32xf32>, vector<8x32xf32> -> vector<8x32xf32>
    %c85 = arith.constant 85 : index
    %c0_8 = arith.constant 0 : index
    %14 = vector.load %arg2[%c85, %c0_8] : memref<88x128xf32, #tpu.memory_space<vmem>>, vector<1x32xf32>
    %cst_9 = arith.constant 2.000000e+00 : f32
    %15 = vector.broadcast %cst_9 : f32 to vector<8x32xf32>
    %16 = arith.mulf %15, %13 : vector<8x32xf32>
    %17 = vector.broadcast %14 : vector<1x32xf32> to vector<8x32xf32>
    %18 = arith.subf %17, %16 : vector<8x32xf32>
    %19 = tpu.iota {dimensions = array<i32: 1>} : vector<8x32xi32>
    %cst_10 = arith.constant dense<0x7F800000> : vector<8xf32>
    %20 = vector.multi_reduction <minimumf>, %18, %cst_10 [1] : vector<8x32xf32> to vector<8xf32>
    %21 = vector.shape_cast %20 : vector<8xf32> to vector<8x1xf32>
    %22 = vector.broadcast %21 : vector<8x1xf32> to vector<8x32xf32>
    %23 = arith.cmpf oeq, %18, %22 : vector<8x32xf32>
    %c32_i32 = arith.constant 32 : i32
    %24 = vector.broadcast %c32_i32 : i32 to vector<8x32xi32>
    %25 = arith.select %23, %19, %24 : vector<8x32xi1>, vector<8x32xi32>
    %cst_11 = arith.constant dense<2147483647> : vector<8xi32>
    %26 = vector.multi_reduction <minsi>, %25, %cst_11 [1] : vector<8x32xi32> to vector<8xi32>
    %27 = vector.shape_cast %26 : vector<8xi32> to vector<8x1xi32>
    %28 = vector.broadcast %27 : vector<8x1xi32> to vector<8x32xi32>
    %29 = arith.cmpi eq, %19, %28 : vector<8x32xi32>
    %30 = arith.extui %29 : vector<8x32xi1> to vector<8x32xi32>
    %31 = arith.sitofp %30 : vector<8x32xi32> to vector<8x32xf32>
    %c32_12 = arith.constant 32 : index
    %c48 = arith.constant 48 : index
    %32 = vector.load %arg2[%c32_12, %c48] : memref<88x128xf32, #tpu.memory_space<vmem>>, vector<32x16xf32>
    %cst_13 = arith.constant dense<0.000000e+00> : vector<8x16xf32>
    %33 = tpu.matmul %31, %32, %cst_13 {dimension_numbers = #tpu.dot_dimension_numbers<[1], [0], [0], [1], [0, 0, 1, 1], [], []>} : vector<8x32xf32>, vector<32x16xf32>, vector<8x16xf32> -> vector<8x16xf32>
    %34 = arith.subf %33, %11 : vector<8x16xf32>
    %35 = arith.mulf %34, %34 : vector<8x16xf32>
    %36 = vector.shape_cast %35 : vector<8x16xf32> to vector<1x8x16xf32>
    %cst_14 = arith.constant dense<0.000000e+00> : vector<1xf32>
    %37 = vector.multi_reduction <add>, %36, %cst_14 [1, 2] : vector<1x8x16xf32> to vector<1xf32>
    %38 = vector.shape_cast %37 : vector<1xf32> to vector<1x1x1xf32>
    %39 = vector.extract %38[0, 0, 0] : f32 from vector<1x1x1xf32>
    %cst_15 = arith.constant 1.562500e-02 : f32
    %40 = arith.mulf %39, %cst_15 : f32
    %41 = vector.broadcast %40 : f32 to vector<8x128xf32>
    %c0_16 = arith.constant 0 : index
    %c0_17 = arith.constant 0 : index
    %42 = vector.load %arg4[%c0_16, %c0_17] : memref<8x128xf32, #tpu.memory_space<vmem>>, vector<8x128xf32>
    tpu.vector_store %arg4[%c0_16, %c0_17], %41 {strides = array<i32>} : memref<8x128xf32, #tpu.memory_space<vmem>>, vector<8x128xf32>,
    %c64_18 = arith.constant 64 : index
    %c0_19 = arith.constant 0 : index
    %43 = vector.load %arg2[%c64_18, %c0_19] : memref<88x128xf32, #tpu.memory_space<vmem>>, vector<16x32xf32>
    %cst_20 = arith.constant dense<0.000000e+00> : vector<8x32xf32>
    %44 = tpu.matmul %33, %43, %cst_20 {dimension_numbers = #tpu.dot_dimension_numbers<[1], [0], [0], [1], [0, 0, 1, 1], [], []>} : vector<8x16xf32>, vector<16x32xf32>, vector<8x32xf32> -> vector<8x32xf32>
    %c82 = arith.constant 82 : index
    %c0_21 = arith.constant 0 : index
    %45 = vector.load %arg2[%c82, %c0_21] : memref<88x128xf32, #tpu.memory_space<vmem>>, vector<1x32xf32>
    %46 = vector.broadcast %45 : vector<1x32xf32> to vector<8x32xf32>
    %47 = arith.addf %44, %46 : vector<8x32xf32>
    %48 = math.tanh %47 : vector<8x32xf32>
    %c32_22 = arith.constant 32 : index
    %c0_23 = arith.constant 0 : index
    %49 = vector.load %arg2[%c32_22, %c0_23] : memref<88x128xf32, #tpu.memory_space<vmem>>, vector<32x32xf32>
    %cst_24 = arith.constant dense<0.000000e+00> : vector<8x32xf32>
    %50 = tpu.matmul %48, %49, %cst_24 {dimension_numbers = #tpu.dot_dimension_numbers<[1], [0], [0], [1], [0, 0, 1, 1], [], []>} : vector<8x32xf32>, vector<32x32xf32>, vector<8x32xf32> -> vector<8x32xf32>
    %c83 = arith.constant 83 : index
    %c0_25 = arith.constant 0 : index
    %51 = vector.load %arg2[%c83, %c0_25] : memref<88x128xf32, #tpu.memory_space<vmem>>, vector<1x32xf32>
    %52 = vector.broadcast %51 : vector<1x32xf32> to vector<8x32xf32>
    %53 = arith.addf %50, %52 : vector<8x32xf32>
    %54 = math.tanh %53 : vector<8x32xf32>
    %c0_26 = arith.constant 0 : index
    %c0_27 = arith.constant 0 : index
    %55 = vector.load %arg2[%c0_26, %c0_27] : memref<88x128xf32, #tpu.memory_space<vmem>>, vector<32x128xf32>
    %cst_28 = arith.constant dense<0.000000e+00> : vector<8x128xf32>
    %56 = tpu.matmul %54, %55, %cst_28 {dimension_numbers = #tpu.dot_dimension_numbers<[1], [0], [0], [1], [0, 0, 1, 1], [], []>} : vector<8x32xf32>, vector<32x128xf32>, vector<8x128xf32> -> vector<8x128xf32>
    %c84 = arith.constant 84 : index
    %c0_29 = arith.constant 0 : index
    %57 = vector.load %arg2[%c84, %c0_29] : memref<88x128xf32, #tpu.memory_space<vmem>>, vector<1x128xf32>
    %58 = vector.broadcast %57 : vector<1x128xf32> to vector<8x128xf32>
    %59 = arith.addf %56, %58 : vector<8x128xf32>
    %c0_30 = arith.constant 0 : index
    %c0_31 = arith.constant 0 : index
    %60 = vector.load %arg3[%c0_30, %c0_31] : memref<8x128xf32, #tpu.memory_space<vmem>>, vector<8x128xf32>
    tpu.vector_store %arg3[%c0_30, %c0_31], %59 {strides = array<i32>} : memref<8x128xf32, #tpu.memory_space<vmem>>, vector<8x128xf32>,
    return
  }
  func.func @transform_0(%arg0: i32) -> (i32, i32) {
    %c0_i32 = arith.constant 0 : i32
    %c0_i32_0 = arith.constant 0 : i32
    return %arg0, %c0_i32 : i32, i32
  }
  func.func @transform_1(%arg0: i32) -> (i32, i32) {
    %c0_i32 = arith.constant 0 : i32
    %c0_i32_0 = arith.constant 0 : i32
    %c0_i32_1 = arith.constant 0 : i32
    return %c0_i32, %c0_i32_0 : i32, i32
  }
  func.func @transform_2(%arg0: i32) -> (i32, i32) {
    %c0_i32 = arith.constant 0 : i32
    %c0_i32_0 = arith.constant 0 : i32
    return %arg0, %c0_i32 : i32, i32
  }
  func.func @transform_3(%arg0: i32) -> (i32, i32) {
    %c0_i32 = arith.constant 0 : i32
    %c0_i32_0 = arith.constant 0 : i32
    return %arg0, %c0_i32 : i32, i32
  }
}

</mosaic_0001>

<llo_original>
// kernel: forward.1
$region0: #{forward.1}
  #allocation0 [shape = 'u32[]', space=smem, size = 0x4, offset = 0x4, fixed_abs, tag = 'smem constant byte address 0x4 - core index']
  #allocation1 [shape = 'u32[144,128]{1,0:T(1,128)}', space=vmem, size = 0x12000, scoped, tag = 'internal scratch']
  %s0 = inlined_call_operand.hbm [shape: f32[8,16], index: 0, kind: input, shape index: {}]
  %s1 = inlined_call_operand.hbm [shape: f32[88,128], index: 1, kind: input, shape index: {}]
  %s2 = inlined_call_operand.vmem [shape: f32[8,128], index: 2, kind: output, shape index: {0}]
  %s3 = inlined_call_operand.vmem [shape: f32[8,128], index: 3, kind: output, shape index: {1}]
  %4 = xla_tuple %s2, %s3
  %s5 = sld [smem:[#allocation0]]
  $region34: #{forward.1} parent=0
    _
  %s7 = ssub.s32 1, %s5
  %s8 = scalar_select 0, %s7, %s5
  $region1: #{forward.1} parent=0
    #allocation2 [shape = 'u8[4096]{0}', space=vmem, size = 0x1000, scoped, tag = 'input window, operand 0, single buffered']
    #allocation3 [shape = 's32[1]{0}', space=sflag, size = 0x4, scoped, tag = 'scoped memory for forward.1']
    #allocation4 [shape = 'u8[45056]{0}', space=vmem, size = 0xb000, scoped, tag = 'input window, operand 1, single buffered']
    #allocation5 [shape = 's32[1]{0}', space=sflag, size = 0x4, scoped, tag = 'scoped memory for forward.1']
    %9 = vsyncpa [#allocation3], 0
    %10 = vsyncpa [#allocation5], 0
    // Predicated region
    $region2: #{forward.1} parent=1 // pred_check
      _
    $region3: #{forward.1} parent=1 // pred_check_branch
      %12 = sbr.rel (0) target = $region5
    $region4: #{forward.1} parent=1 // pred_region
      %s14 = ssub.s32 128, 128
      %15 = vsyncadd [#allocation3], %s14
      %s17 = sshll.u32 [#allocation2], 4
      %s18 = int_to_ptr.vmem [resolvable:$true] %s17
      %20 = dma.hbm_to_vmem [thread:$0]  %s0, 128, %s18, [#allocation3]
    $region5: #{forward.1} parent=1 // pred_fallthru
      _
    // Predicated region
    $region6: #{forward.1} parent=1 // pred_check
      _
    $region7: #{forward.1} parent=1 // pred_check_branch
      %22 = sbr.rel (0) target = $region9
    $region8: #{forward.1} parent=1 // pred_region
      %s24 = ssub.s32 1408, 1408
      %25 = vsyncadd [#allocation5], %s24
      %s26 = sshll.u32 [#allocation4], 4
      %s27 = int_to_ptr.vmem [resolvable:$true] %s26
      %32 = dma.hbm_to_vmem [thread:$0]  %s1, 1408, %s27, [#allocation5], 128, 128, 8
    $region9: #{forward.1} parent=1 // pred_fallthru
      _
    // Predicated region
    $region10: #{forward.1} parent=1 // pred_check
      _
    $region11: #{forward.1} parent=1 // pred_check_branch
      %34 = sbr.rel (0) target = $region13
    $region12: #{forward.1} parent=1 // pred_region
      %35 = dma.done [#allocation3], 128
    $region13: #{forward.1} parent=1 // pred_fallthru
      _
    // Predicated region
    $region14: #{forward.1} parent=1 // pred_check
      _
    $region15: #{forward.1} parent=1 // pred_check_branch
      %37 = sbr.rel (0) target = $region17
    $region16: #{forward.1} parent=1 // pred_region
      %38 = dma.done [#allocation5], 1408
    $region17: #{forward.1} parent=1 // pred_fallthru
      _
    %v39 = vld [vmem:[#allocation2] sm:$0xff]
    %v40 = vld [vmem:[#allocation4 + $0x20] sm:$0xff]
    %v41 = vld [vmem:[#allocation4 + $0x28] sm:$0xff]
    %v42 = vld [vmem:[#allocation4 + $0x50] sm:$0x1]
    %v43 = vlaneseq
    %v44 = vshrl.u32 %v43, 7
    %v45 = vsub.s32 0, %v44
    %v46 = vrot.slane %v42, %v45
    %49 = vrot.lane.b32.xlu0 %v40, 64
    %v50 = vpop.permute.xlu0 %49
    %51 = vrot.lane.b32.xlu0 %v41, 64
    %v52 = vpop.permute.xlu0 %51
    %vm55 = vcmask 130048
    %v57 = vsel %vm55, %v39, 0
    %59 = vmatprep.subr.mxu0 0.0
    %60 = vmatpush1.msra.mxu0 0.0
    %61 = vmatprep.subr.mxu0 0.0
    %62 = vmatpush1.msra.mxu0 0.0
    %63 = vmatprep.subr.mxu0 0.0
    %64 = vmatpush1.msra.mxu0 0.0
    %65 = vmatprep.subr.mxu0 0.0
    %66 = vmatpush1.msra.mxu0 0.0
    %67 = vmatprep.subr.mxu0 0.0
    %68 = vmatpush1.msra.mxu0 0.0
    %69 = vmatprep.subr.mxu0 0.0
    %70 = vmatpush1.msra.mxu0 0.0
    %71 = vmatprep.subr.mxu0 0.0
    %72 = vmatpush1.msra.mxu0 0.0
    %73 = vmatprep.subr.mxu0 0.0
    %74 = vmatpush1.msra.mxu0 0.0
    %75 = vmatprep.subr.mxu0 0.0
    %76 = vmatpush1.msra.mxu0 0.0
    %77 = vmatprep.subr.mxu0 0.0
    %78 = vmatpush1.msra.mxu0 0.0
    %79 = vmatprep.subr.mxu0 0.0
    %80 = vmatpush1.msra.mxu0 0.0
    %81 = vmatprep.subr.mxu0 0.0
    %82 = vmatpush1.msra.mxu0 0.0
    %83 = vmatprep.subr.mxu0 0.0
    %84 = vmatpush1.msra.mxu0 0.0
    %85 = vmatprep.subr.mxu0 0.0
    %86 = vmatpush1.msra.mxu0 0.0
    %87 = vmatprep.subr.mxu0 0.0
    %88 = vmatpush1.msra.mxu0 %v52
    %89 = vmatprep.subr.mxu0 0.0
    %90 = vmatpush1.msra.mxu0 %v50
    %91 = vmatprep.subr.mxu0 0.0
    %92 = vmatpush2.msra.mxu0 0.0
    %93 = vmatprep.subr.mxu0 0.0
    %94 = vmatpush2.msra.mxu0 0.0
    %95 = vmatprep.subr.mxu0 0.0
    %96 = vmatpush2.msra.mxu0 0.0
    %97 = vmatprep.subr.mxu0 0.0
    %98 = vmatpush2.msra.mxu0 0.0
    %99 = vmatprep.subr.mxu0 0.0
    %100 = vmatpush2.msra.mxu0 0.0
    %101 = vmatprep.subr.mxu0 0.0
    %102 = vmatpush2.msra.mxu0 0.0
    %103 = vmatprep.subr.mxu0 0.0
    %104 = vmatpush2.msra.mxu0 0.0
    %105 = vmatprep.subr.mxu0 0.0
    %106 = vmatpush2.msra.mxu0 0.0
    %107 = vmatprep.subr.mxu0 0.0
    %108 = vmatpush2.msra.mxu0 0.0
    %109 = vmatprep.subr.mxu0 0.0
    %110 = vmatpush2.msra.mxu0 0.0
    %111 = vmatprep.subr.mxu0 0.0
    %112 = vmatpush2.msra.mxu0 0.0
    %113 = vmatprep.subr.mxu0 0.0
    %114 = vmatpush2.msra.mxu0 0.0
    %115 = vmatprep.subr.mxu0 0.0
    %116 = vmatpush2.msra.mxu0 0.0
    %117 = vmatprep.subr.mxu0 0.0
    %118 = vmatpush2.msra.mxu0 0.0
    %119 = vmatprep.subr.mxu0 0.0
    %120 = vmatpush2.msra.mxu0 0.0
    %121 = vmatprep.subr.mxu0 0.0
    %122 = vmatpush2.msra.mxu0 0.0
    %123 = vmatprep.mubr.f32.mxu0 0.0
    %124 = vmatmul.mubr.f32.gmra.mxu0 %v57
    %v125 = vpop.f32.mrf.mxu0
    %v126 = vadd.f32 %v46, %v125
    %v127 = vpop.f32.mrf.mxu0
    %128 = vdwg.mxu0
    %v129 = vtanh.pop %v126
    %v130 = vld [vmem:[#allocation4 + $0x20] sm:$0xff]
    %v131 = vld [vmem:[#allocation4 + $0x28] sm:$0xff]
    %v132 = vld [vmem:[#allocation4 + $0x30] sm:$0xff]
    %v133 = vld [vmem:[#allocation4 + $0x38] sm:$0xff]
    %v134 = vld [vmem:[#allocation4 + $0x51] sm:$0x1]
    %v135 = vlaneseq
    %v136 = vshrl.u32 %v135, 7
    %v137 = vsub.s32 0, %v136
    %v138 = vrot.slane %v134, %v137
    %143 = vrot.lane.b32.xlu0 %v130, 96
    %v144 = vpop.permute.xlu0 %143
    %145 = vrot.lane.b32.xlu0 %v131, 96
    %v146 = vpop.permute.xlu0 %145
    %147 = vrot.lane.b32.xlu0 %v132, 96
    %v148 = vpop.permute.xlu0 %147
    %149 = vrot.lane.b32.xlu0 %v133, 96
    %v150 = vpop.permute.xlu0 %149
    %vm155 = vcmask 261120
    %v157 = vsel %vm155, %v129, 0
    %159 = vmatprep.subr.mxu0 0.0
    %160 = vmatpush1.msra.mxu0 0.0
    %161 = vmatprep.subr.mxu0 0.0
    %162 = vmatpush1.msra.mxu0 0.0
    %163 = vmatprep.subr.mxu0 0.0
    %164 = vmatpush1.msra.mxu0 0.0
    %165 = vmatprep.subr.mxu0 0.0
    %166 = vmatpush1.msra.mxu0 0.0
    %167 = vmatprep.subr.mxu0 0.0
    %168 = vmatpush1.msra.mxu0 0.0
    %169 = vmatprep.subr.mxu0 0.0
    %170 = vmatpush1.msra.mxu0 0.0
    %171 = vmatprep.subr.mxu0 0.0
    %172 = vmatpush1.msra.mxu0 0.0
    %173 = vmatprep.subr.mxu0 0.0
    %174 = vmatpush1.msra.mxu0 0.0
    %175 = vmatprep.subr.mxu0 0.0
    %176 = vmatpush1.msra.mxu0 0.0
    %177 = vmatprep.subr.mxu0 0.0
    %178 = vmatpush1.msra.mxu0 0.0
    %179 = vmatprep.subr.mxu0 0.0
    %180 = vmatpush1.msra.mxu0 0.0
    %181 = vmatprep.subr.mxu0 0.0
    %182 = vmatpush1.msra.mxu0 0.0
    %183 = vmatprep.subr.mxu0 0.0
    %184 = vmatpush1.msra.mxu0 %v150
    %185 = vmatprep.subr.mxu0 0.0
    %186 = vmatpush1.msra.mxu0 %v148
    %187 = vmatprep.subr.mxu0 0.0
    %188 = vmatpush1.msra.mxu0 %v146
    %189 = vmatprep.subr.mxu0 0.0
    %190 = vmatpush1.msra.mxu0 %v144
    %191 = vmatprep.subr.mxu0 0.0
    %192 = vmatpush2.msra.mxu0 0.0
    %193 = vmatprep.subr.mxu0 0.0
    %194 = vmatpush2.msra.mxu0 0.0
    %195 = vmatprep.subr.mxu0 0.0
    %196 = vmatpush2.msra.mxu0 0.0
    %197 = vmatprep.subr.mxu0 0.0
    %198 = vmatpush2.msra.mxu0 0.0
    %199 = vmatprep.subr.mxu0 0.0
    %200 = vmatpush2.msra.mxu0 0.0
    %201 = vmatprep.subr.mxu0 0.0
    %202 = vmatpush2.msra.mxu0 0.0
    %203 = vmatprep.subr.mxu0 0.0
    %204 = vmatpush2.msra.mxu0 0.0
    %205 = vmatprep.subr.mxu0 0.0
    %206 = vmatpush2.msra.mxu0 0.0
    %207 = vmatprep.subr.mxu0 0.0
    %208 = vmatpush2.msra.mxu0 0.0
    %209 = vmatprep.subr.mxu0 0.0
    %210 = vmatpush2.msra.mxu0 0.0
    %211 = vmatprep.subr.mxu0 0.0
    %212 = vmatpush2.msra.mxu0 0.0
    %213 = vmatprep.subr.mxu0 0.0
    %214 = vmatpush2.msra.mxu0 0.0
    %215 = vmatprep.subr.mxu0 0.0
    %216 = vmatpush2.msra.mxu0 0.0
    %217 = vmatprep.subr.mxu0 0.0
    %218 = vmatpush2.msra.mxu0 0.0
    %219 = vmatprep.subr.mxu0 0.0
    %220 = vmatpush2.msra.mxu0 0.0
    %221 = vmatprep.subr.mxu0 0.0
    %222 = vmatpush2.msra.mxu0 0.0
    %223 = vmatprep.mubr.f32.mxu0 0.0
    %224 = vmatmul.mubr.f32.gmra.mxu0 %v157
    %v225 = vpop.f32.mrf.mxu0
    %v226 = vadd.f32 %v138, %v225
    %v227 = vpop.f32.mrf.mxu0
    %228 = vdwg.mxu0
    %229 = vrot.lane.b32.xlu0 %v40, 32
    %v230 = vpop.permute.xlu0 %229
    %231 = vrot.lane.b32.xlu0 %v41, 32
    %v232 = vpop.permute.xlu0 %231
    %v236 = vsel %vm55, %v226, 0
    %238 = vmatprep.subr.mxu0 0.0
    %239 = vmatpush1.msra.mxu0 0.0
    %240 = vmatprep.subr.mxu0 0.0
    %241 = vmatpush1.msra.mxu0 0.0
    %242 = vmatprep.subr.mxu0 0.0
    %243 = vmatpush1.msra.mxu0 0.0
    %244 = vmatprep.subr.mxu0 0.0
    %245 = vmatpush1.msra.mxu0 0.0
    %246 = vmatprep.subr.mxu0 0.0
    %247 = vmatpush1.msra.mxu0 0.0
    %248 = vmatprep.subr.mxu0 0.0
    %249 = vmatpush1.msra.mxu0 0.0
    %250 = vmatprep.subr.mxu0 0.0
    %251 = vmatpush1.msra.mxu0 0.0
    %252 = vmatprep.subr.mxu0 0.0
    %253 = vmatpush1.msra.mxu0 0.0
    %254 = vmatprep.subr.mxu0 0.0
    %255 = vmatpush1.msra.mxu0 0.0
    %256 = vmatprep.subr.mxu0 0.0
    %257 = vmatpush1.msra.mxu0 0.0
    %258 = vmatprep.subr.mxu0 0.0
    %259 = vmatpush1.msra.mxu0 0.0
    %260 = vmatprep.subr.mxu0 0.0
    %261 = vmatpush1.msra.mxu0 0.0
    %262 = vmatprep.subr.mxu0 0.0
    %263 = vmatpush1.msra.mxu0 0.0
    %264 = vmatprep.subr.mxu0 0.0
    %265 = vmatpush1.msra.mxu0 0.0
    %266 = vmatprep.subr.mxu0 0.0
    %267 = vmatpush1.msra.mxu0 %v232
    %268 = vmatprep.subr.mxu0 0.0
    %269 = vmatpush1.msra.mxu0 %v230
    %270 = vmatprep.subr.mxu0 0.0
    %271 = vmatpush2.msra.mxu0 0.0
    %272 = vmatprep.subr.mxu0 0.0
    %273 = vmatpush2.msra.mxu0 0.0
    %274 = vmatprep.subr.mxu0 0.0
    %275 = vmatpush2.msra.mxu0 0.0
    %276 = vmatprep.subr.mxu0 0.0
    %277 = vmatpush2.msra.mxu0 0.0
    %278 = vmatprep.subr.mxu0 0.0
    %279 = vmatpush2.msra.mxu0 0.0
    %280 = vmatprep.subr.mxu0 0.0
    %281 = vmatpush2.msra.mxu0 0.0
    %282 = vmatprep.subr.mxu0 0.0
    %283 = vmatpush2.msra.mxu0 0.0
    %284 = vmatprep.subr.mxu0 0.0
    %285 = vmatpush2.msra.mxu0 0.0
    %286 = vmatprep.subr.mxu0 0.0
    %287 = vmatpush2.msra.mxu0 0.0
    %288 = vmatprep.subr.mxu0 0.0
    %289 = vmatpush2.msra.mxu0 0.0
    %290 = vmatprep.subr.mxu0 0.0
    %291 = vmatpush2.msra.mxu0 0.0
    %292 = vmatprep.subr.mxu0 0.0
    %293 = vmatpush2.msra.mxu0 0.0
    %294 = vmatprep.subr.mxu0 0.0
    %295 = vmatpush2.msra.mxu0 0.0
    %296 = vmatprep.subr.mxu0 0.0
    %297 = vmatpush2.msra.mxu0 0.0
    %298 = vmatprep.subr.mxu0 0.0
    %299 = vmatpush2.msra.mxu0 0.0
    %300 = vmatprep.subr.mxu0 0.0
    %301 = vmatpush2.msra.mxu0 0.0
    %302 = vmatprep.mubr.f32.mxu0 0.0
    %303 = vmatmul.mubr.f32.gmra.mxu0 %v236
    %v304 = vpop.f32.mrf.mxu0
    %v305 = vadd.f32 0.0, %v304
    %v306 = vpop.f32.mrf.mxu0
    %307 = vdwg.mxu0
    %v308 = vld [vmem:[#allocation4 + $0x55] sm:$0x1]
    %v309 = vmul.f32 %v305, 2.0
    %v310 = vlaneseq
    %v311 = vshrl.u32 %v310, 7
    %v312 = vsub.s32 0, %v311
    %v313 = vrot.slane %v308, %v312
    %v314 = vsub.f32 %v313, %v309
    %v315 = vlaneseq
    %v316 = vand.u32 %v315, 127
    %v317 = vsel %vm155, %v314, inf
    %318 = vmin.xlane.f32.xlu0 %v317
    %v319 = vpop.xlane.xlu0 %318
    %vm320 = vcmp.eq.f32.partialorder %v314, %v319
    %v321 = vsel %vm320, %v316, 32
    %v322 = vsel %vm155, %v321, 2147483647
    %v323 = vand.u32 %v322, 65535
    %v324 = vshra.s32 %v322, 16
    %v325 = vcvt.s32.f32 %v323
    %v326 = vcvt.s32.f32 %v324
    %327 = vmin.xlane.f32.xlu0 %v326
    %v328 = vpop.xlane.xlu0 %327
    %vm329 = vcmp.eq.f32.partialorder %v326, %v328
    %v330 = vsel %vm329, %v325, inf
    %331 = vmin.xlane.f32.xlu0 %v330
    %v332 = vpop.xlane.xlu0 %331
    %v333 = vcvt.f32.s32 %v332
    %v334 = vcvt.f32.s32 %v328
    %v335 = vshll.u32 %v334, 16
    %v336 = vadd.s32 %v335, %v333
    %vm337 = vcmp.eq.s32.totalorder %v316, %v336
    %v338 = vsel %vm337, 1, 0
    %v339 = vcvt.s32.f32 %v338
    %340 = vrot.lane.b32.xlu0 %v130, 80
    %v341 = vpop.permute.xlu0 %340
    %342 = vrot.lane.b32.xlu0 %v131, 80
    %v343 = vpop.permute.xlu0 %342
    %344 = vrot.lane.b32.xlu0 %v132, 80
    %v345 = vpop.permute.xlu0 %344
    %346 = vrot.lane.b32.xlu0 %v133, 80
    %v347 = vpop.permute.xlu0 %346
    %v353 = vsel %vm155, %v339, 0
    %355 = vmatprep.subr.mxu0 0.0
    %356 = vmatpush1.msra.mxu0 0.0
    %357 = vmatprep.subr.mxu0 0.0
    %358 = vmatpush1.msra.mxu0 0.0
    %359 = vmatprep.subr.mxu0 0.0
    %360 = vmatpush1.msra.mxu0 0.0
    %361 = vmatprep.subr.mxu0 0.0
    %362 = vmatpush1.msra.mxu0 0.0
    %363 = vmatprep.subr.mxu0 0.0
    %364 = vmatpush1.msra.mxu0 0.0
    %365 = vmatprep.subr.mxu0 0.0
    %366 = vmatpush1.msra.mxu0 0.0
    %367 = vmatprep.subr.mxu0 0.0
    %368 = vmatpush1.msra.mxu0 0.0
    %369 = vmatprep.subr.mxu0 0.0
    %370 = vmatpush1.msra.mxu0 0.0
    %371 = vmatprep.subr.mxu0 0.0
    %372 = vmatpush1.msra.mxu0 0.0
    %373 = vmatprep.subr.mxu0 0.0
    %374 = vmatpush1.msra.mxu0 0.0
    %375 = vmatprep.subr.mxu0 0.0
    %376 = vmatpush1.msra.mxu0 0.0
    %377 = vmatprep.subr.mxu0 0.0
    %378 = vmatpush1.msra.mxu0 0.0
    %379 = vmatprep.subr.mxu0 0.0
    %380 = vmatpush1.msra.mxu0 %v347
    %381 = vmatprep.subr.mxu0 0.0
    %382 = vmatpush1.msra.mxu0 %v345
    %383 = vmatprep.subr.mxu0 0.0
    %384 = vmatpush1.msra.mxu0 %v343
    %385 = vmatprep.subr.mxu0 0.0
    %386 = vmatpush1.msra.mxu0 %v341
    %387 = vmatprep.subr.mxu0 0.0
    %388 = vmatpush2.msra.mxu0 0.0
    %389 = vmatprep.subr.mxu0 0.0
    %390 = vmatpush2.msra.mxu0 0.0
    %391 = vmatprep.subr.mxu0 0.0
    %392 = vmatpush2.msra.mxu0 0.0
    %393 = vmatprep.subr.mxu0 0.0
    %394 = vmatpush2.msra.mxu0 0.0
    %395 = vmatprep.subr.mxu0 0.0
    %396 = vmatpush2.msra.mxu0 0.0
    %397 = vmatprep.subr.mxu0 0.0
    %398 = vmatpush2.msra.mxu0 0.0
    %399 = vmatprep.subr.mxu0 0.0
    %400 = vmatpush2.msra.mxu0 0.0
    %401 = vmatprep.subr.mxu0 0.0
    %402 = vmatpush2.msra.mxu0 0.0
    %403 = vmatprep.subr.mxu0 0.0
    %404 = vmatpush2.msra.mxu0 0.0
    %405 = vmatprep.subr.mxu0 0.0
    %406 = vmatpush2.msra.mxu0 0.0
    %407 = vmatprep.subr.mxu0 0.0
    %408 = vmatpush2.msra.mxu0 0.0
    %409 = vmatprep.subr.mxu0 0.0
    %410 = vmatpush2.msra.mxu0 0.0
    %411 = vmatprep.subr.mxu0 0.0
    %412 = vmatpush2.msra.mxu0 0.0
    %413 = vmatprep.subr.mxu0 0.0
    %414 = vmatpush2.msra.mxu0 0.0
    %415 = vmatprep.subr.mxu0 0.0
    %416 = vmatpush2.msra.mxu0 0.0
    %417 = vmatprep.subr.mxu0 0.0
    %418 = vmatpush2.msra.mxu0 0.0
    %419 = vmatprep.mubr.f32.mxu0 0.0
    %420 = vmatmul.mubr.f32.gmra.mxu0 %v353
    %v421 = vpop.f32.mrf.mxu0
    %v422 = vadd.f32 0.0, %v421
    %v423 = vpop.f32.mrf.mxu0
    %424 = vdwg.mxu0
    %v425 = vsub.f32 %v422, %v226
    %v426 = vmul.f32 %v425, %v425
    %v427 = vsel %vm55, %v426, 0.0
    %428 = vadd.xlane.f32.xlu0 %v427
    %v429 = vpop.xlane.xlu0 %428
    %v430 = vrot.slane %v429, 4
    %v431 = vadd.f32 %v429, %v430
    %v432 = vrot.slane %v431, 2
    %v433 = vadd.f32 %v431, %v432
    %v434 = vrot.slane %v433, 1
    %v435 = vadd.f32 %v433, %v434
    %s436 = vtos %v435
    %s437 = smul.f32 %s436, 0.015625
    %v438 = vstv %s437
    %439 = vst [vmem:[%s3] sm:$0xff] %v438
    %v440 = vld [vmem:[#allocation4 + $0x40] sm:$0xff]
    %v441 = vld [vmem:[#allocation4 + $0x48] sm:$0xff]
    %v442 = vld [vmem:[#allocation4 + $0x52] sm:$0x1]
    %v443 = vlaneseq
    %v444 = vshrl.u32 %v443, 7
    %v445 = vsub.s32 0, %v444
    %v446 = vrot.slane %v442, %v445
    %v448 = vsel %vm55, %v422, 0
    %450 = vmatprep.subr.mxu0 0.0
    %451 = vmatpush1.msra.mxu0 0.0
    %452 = vmatprep.subr.mxu0 0.0
    %453 = vmatpush1.msra.mxu0 0.0
    %454 = vmatprep.subr.mxu0 0.0
    %455 = vmatpush1.msra.mxu0 0.0
    %456 = vmatprep.subr.mxu0 0.0
    %457 = vmatpush1.msra.mxu0 0.0
    %458 = vmatprep.subr.mxu0 0.0
    %459 = vmatpush1.msra.mxu0 0.0
    %460 = vmatprep.subr.mxu0 0.0
    %461 = vmatpush1.msra.mxu0 0.0
    %462 = vmatprep.subr.mxu0 0.0
    %463 = vmatpush1.msra.mxu0 0.0
    %464 = vmatprep.subr.mxu0 0.0
    %465 = vmatpush1.msra.mxu0 0.0
    %466 = vmatprep.subr.mxu0 0.0
    %467 = vmatpush1.msra.mxu0 0.0
    %468 = vmatprep.subr.mxu0 0.0
    %469 = vmatpush1.msra.mxu0 0.0
    %470 = vmatprep.subr.mxu0 0.0
    %471 = vmatpush1.msra.mxu0 0.0
    %472 = vmatprep.subr.mxu0 0.0
    %473 = vmatpush1.msra.mxu0 0.0
    %474 = vmatprep.subr.mxu0 0.0
    %475 = vmatpush1.msra.mxu0 0.0
    %476 = vmatprep.subr.mxu0 0.0
    %477 = vmatpush1.msra.mxu0 0.0
    %478 = vmatprep.subr.mxu0 0.0
    %479 = vmatpush1.msra.mxu0 %v441
    %480 = vmatprep.subr.mxu0 0.0
    %481 = vmatpush1.msra.mxu0 %v440
    %482 = vmatprep.subr.mxu0 0.0
    %483 = vmatpush2.msra.mxu0 0.0
    %484 = vmatprep.subr.mxu0 0.0
    %485 = vmatpush2.msra.mxu0 0.0
    %486 = vmatprep.subr.mxu0 0.0
    %487 = vmatpush2.msra.mxu0 0.0
    %488 = vmatprep.subr.mxu0 0.0
    %489 = vmatpush2.msra.mxu0 0.0
    %490 = vmatprep.subr.mxu0 0.0
    %491 = vmatpush2.msra.mxu0 0.0
    %492 = vmatprep.subr.mxu0 0.0
    %493 = vmatpush2.msra.mxu0 0.0
    %494 = vmatprep.subr.mxu0 0.0
    %495 = vmatpush2.msra.mxu0 0.0
    %496 = vmatprep.subr.mxu0 0.0
    %497 = vmatpush2.msra.mxu0 0.0
    %498 = vmatprep.subr.mxu0 0.0
    %499 = vmatpush2.msra.mxu0 0.0
    %500 = vmatprep.subr.mxu0 0.0
    %501 = vmatpush2.msra.mxu0 0.0
    %502 = vmatprep.subr.mxu0 0.0
    %503 = vmatpush2.msra.mxu0 0.0
    %504 = vmatprep.subr.mxu0 0.0
    %505 = vmatpush2.msra.mxu0 0.0
    %506 = vmatprep.subr.mxu0 0.0
    %507 = vmatpush2.msra.mxu0 0.0
    %508 = vmatprep.subr.mxu0 0.0
    %509 = vmatpush2.msra.mxu0 0.0
    %510 = vmatprep.subr.mxu0 0.0
    %511 = vmatpush2.msra.mxu0 0.0
    %512 = vmatprep.subr.mxu0 0.0
    %513 = vmatpush2.msra.mxu0 0.0
    %514 = vmatprep.mubr.f32.mxu0 0.0
    %515 = vmatmul.mubr.f32.gmra.mxu0 %v448
    %v516 = vpop.f32.mrf.mxu0
    %v517 = vadd.f32 %v446, %v516
    %v518 = vpop.f32.mrf.mxu0
    %519 = vdwg.mxu0
    %v520 = vtanh.pop %v517
    %v521 = vld [vmem:[#allocation4 + $0x20] sm:$0xff]
    %v522 = vld [vmem:[#allocation4 + $0x28] sm:$0xff]
    %v523 = vld [vmem:[#allocation4 + $0x30] sm:$0xff]
    %v524 = vld [vmem:[#allocation4 + $0x38] sm:$0xff]
    %v525 = vld [vmem:[#allocation4 + $0x53] sm:$0x1]
    %v526 = vlaneseq
    %v527 = vshrl.u32 %v526, 7
    %v528 = vsub.s32 0, %v527
    %v529 = vrot.slane %v525, %v528
    %v531 = vsel %vm155, %v520, 0
    %533 = vmatprep.subr.mxu0 0.0
    %534 = vmatpush1.msra.mxu0 0.0
    %535 = vmatprep.subr.mxu0 0.0
    %536 = vmatpush1.msra.mxu0 0.0
    %537 = vmatprep.subr.mxu0 0.0
    %538 = vmatpush1.msra.mxu0 0.0
    %539 = vmatprep.subr.mxu0 0.0
    %540 = vmatpush1.msra.mxu0 0.0
    %541 = vmatprep.subr.mxu0 0.0
    %542 = vmatpush1.msra.mxu0 0.0
    %543 = vmatprep.subr.mxu0 0.0
    %544 = vmatpush1.msra.mxu0 0.0
    %545 = vmatprep.subr.mxu0 0.0
    %546 = vmatpush1.msra.mxu0 0.0
    %547 = vmatprep.subr.mxu0 0.0
    %548 = vmatpush1.msra.mxu0 0.0
    %549 = vmatprep.subr.mxu0 0.0
    %550 = vmatpush1.msra.mxu0 0.0
    %551 = vmatprep.subr.mxu0 0.0
    %552 = vmatpush1.msra.mxu0 0.0
    %553 = vmatprep.subr.mxu0 0.0
    %554 = vmatpush1.msra.mxu0 0.0
    %555 = vmatprep.subr.mxu0 0.0
    %556 = vmatpush1.msra.mxu0 0.0
    %557 = vmatprep.subr.mxu0 0.0
    %558 = vmatpush1.msra.mxu0 %v524
    %559 = vmatprep.subr.mxu0 0.0
    %560 = vmatpush1.msra.mxu0 %v523
    %561 = vmatprep.subr.mxu0 0.0
    %562 = vmatpush1.msra.mxu0 %v522
    %563 = vmatprep.subr.mxu0 0.0
    %564 = vmatpush1.msra.mxu0 %v521
    %565 = vmatprep.subr.mxu0 0.0
    %566 = vmatpush2.msra.mxu0 0.0
    %567 = vmatprep.subr.mxu0 0.0
    %568 = vmatpush2.msra.mxu0 0.0
    %569 = vmatprep.subr.mxu0 0.0
    %570 = vmatpush2.msra.mxu0 0.0
    %571 = vmatprep.subr.mxu0 0.0
    %572 = vmatpush2.msra.mxu0 0.0
    %573 = vmatprep.subr.mxu0 0.0
    %574 = vmatpush2.msra.mxu0 0.0
    %575 = vmatprep.subr.mxu0 0.0
    %576 = vmatpush2.msra.mxu0 0.0
    %577 = vmatprep.subr.mxu0 0.0
    %578 = vmatpush2.msra.mxu0 0.0
    %579 = vmatprep.subr.mxu0 0.0
    %580 = vmatpush2.msra.mxu0 0.0
    %581 = vmatprep.subr.mxu0 0.0
    %582 = vmatpush2.msra.mxu0 0.0
    %583 = vmatprep.subr.mxu0 0.0
    %584 = vmatpush2.msra.mxu0 0.0
    %585 = vmatprep.subr.mxu0 0.0
    %586 = vmatpush2.msra.mxu0 0.0
    %587 = vmatprep.subr.mxu0 0.0
    %588 = vmatpush2.msra.mxu0 0.0
    %589 = vmatprep.subr.mxu0 0.0
    %590 = vmatpush2.msra.mxu0 0.0
    %591 = vmatprep.subr.mxu0 0.0
    %592 = vmatpush2.msra.mxu0 0.0
    %593 = vmatprep.subr.mxu0 0.0
    %594 = vmatpush2.msra.mxu0 0.0
    %595 = vmatprep.subr.mxu0 0.0
    %596 = vmatpush2.msra.mxu0 0.0
    %597 = vmatprep.mubr.f32.mxu0 0.0
    %598 = vmatmul.mubr.f32.gmra.mxu0 %v531
    %v599 = vpop.f32.mrf.mxu0
    %v600 = vadd.f32 %v529, %v599
    %v601 = vpop.f32.mrf.mxu0
    %602 = vdwg.mxu0
    %v603 = vtanh.pop %v600
    %v604 = vld [vmem:[#allocation4] sm:$0xff]
    %v605 = vld [vmem:[#allocation4 + $0x8] sm:$0xff]
    %v606 = vld [vmem:[#allocation4 + $0x10] sm:$0xff]
    %v607 = vld [vmem:[#allocation4 + $0x18] sm:$0xff]
    %v608 = vld [vmem:[#allocation4 + $0x54] sm:$0x1]
    %v609 = vlaneseq
    %v610 = vshrl.u32 %v609, 7
    %v611 = vsub.s32 0, %v610
    %v612 = vrot.slane %v608, %v611
    %v614 = vsel %vm155, %v603, 0
    %616 = vmatprep.subr.mxu0 0.0
    %617 = vmatpush1.msra.mxu0 0.0
    %618 = vmatprep.subr.mxu0 0.0
    %619 = vmatpush1.msra.mxu0 0.0
    %620 = vmatprep.subr.mxu0 0.0
    %621 = vmatpush1.msra.mxu0 0.0
    %622 = vmatprep.subr.mxu0 0.0
    %623 = vmatpush1.msra.mxu0 0.0
    %624 = vmatprep.subr.mxu0 0.0
    %625 = vmatpush1.msra.mxu0 0.0
    %626 = vmatprep.subr.mxu0 0.0
    %627 = vmatpush1.msra.mxu0 0.0
    %628 = vmatprep.subr.mxu0 0.0
    %629 = vmatpush1.msra.mxu0 0.0
    %630 = vmatprep.subr.mxu0 0.0
    %631 = vmatpush1.msra.mxu0 0.0
    %632 = vmatprep.subr.mxu0 0.0
    %633 = vmatpush1.msra.mxu0 0.0
    %634 = vmatprep.subr.mxu0 0.0
    %635 = vmatpush1.msra.mxu0 0.0
    %636 = vmatprep.subr.mxu0 0.0
    %637 = vmatpush1.msra.mxu0 0.0
    %638 = vmatprep.subr.mxu0 0.0
    %639 = vmatpush1.msra.mxu0 0.0
    %640 = vmatprep.subr.mxu0 0.0
    %641 = vmatpush1.msra.mxu0 %v607
    %642 = vmatprep.subr.mxu0 0.0
    %643 = vmatpush1.msra.mxu0 %v606
    %644 = vmatprep.subr.mxu0 0.0
    %645 = vmatpush1.msra.mxu0 %v605
    %646 = vmatprep.subr.mxu0 0.0
    %647 = vmatpush1.msra.mxu0 %v604
    %648 = vmatprep.subr.mxu0 0.0
    %649 = vmatpush2.msra.mxu0 0.0
    %650 = vmatprep.subr.mxu0 0.0
    %651 = vmatpush2.msra.mxu0 0.0
    %652 = vmatprep.subr.mxu0 0.0
    %653 = vmatpush2.msra.mxu0 0.0
    %654 = vmatprep.subr.mxu0 0.0
    %655 = vmatpush2.msra.mxu0 0.0
    %656 = vmatprep.subr.mxu0 0.0
    %657 = vmatpush2.msra.mxu0 0.0
    %658 = vmatprep.subr.mxu0 0.0
    %659 = vmatpush2.msra.mxu0 0.0
    %660 = vmatprep.subr.mxu0 0.0
    %661 = vmatpush2.msra.mxu0 0.0
    %662 = vmatprep.subr.mxu0 0.0
    %663 = vmatpush2.msra.mxu0 0.0
    %664 = vmatprep.subr.mxu0 0.0
    %665 = vmatpush2.msra.mxu0 0.0
    %666 = vmatprep.subr.mxu0 0.0
    %667 = vmatpush2.msra.mxu0 0.0
    %668 = vmatprep.subr.mxu0 0.0
    %669 = vmatpush2.msra.mxu0 0.0
    %670 = vmatprep.subr.mxu0 0.0
    %671 = vmatpush2.msra.mxu0 0.0
    %672 = vmatprep.subr.mxu0 0.0
    %673 = vmatpush2.msra.mxu0 0.0
    %674 = vmatprep.subr.mxu0 0.0
    %675 = vmatpush2.msra.mxu0 0.0
    %676 = vmatprep.subr.mxu0 0.0
    %677 = vmatpush2.msra.mxu0 0.0
    %678 = vmatprep.subr.mxu0 0.0
    %679 = vmatpush2.msra.mxu0 0.0
    %680 = vmatprep.mubr.f32.mxu0 0.0
    %681 = vmatmul.mubr.f32.gmra.mxu0 %v614
    %v682 = vpop.f32.mrf.mxu0
    %v683 = vadd.f32 %v612, %v682
    %v684 = vpop.f32.mrf.mxu0
    %685 = vdwg.mxu0
    %686 = vst [vmem:[%s2] sm:$0xff] %v683
    // Predicated region
    $region18: #{forward.1} parent=1 // pred_check
      _
    $region19: #{forward.1} parent=1 // pred_check_branch
      %688 = sbr.rel (0) target = $region21
    $region20: #{forward.1} parent=1 // pred_region
      _
    $region21: #{forward.1} parent=1 // pred_fallthru
      _
    // Predicated region
    $region22: #{forward.1} parent=1 // pred_check
      _
    $region23: #{forward.1} parent=1 // pred_check_branch
      %690 = sbr.rel (0) target = $region25
    $region24: #{forward.1} parent=1 // pred_region
      _
    $region25: #{forward.1} parent=1 // pred_fallthru
      _
    // Predicated region
    $region26: #{forward.1} parent=1 // pred_check
      _
    $region27: #{forward.1} parent=1 // pred_check_branch
      %692 = sbr.rel (0) target = $region29
    $region28: #{forward.1} parent=1 // pred_region
      _
    $region29: #{forward.1} parent=1 // pred_fallthru
      _
    // Predicated region
    $region30: #{forward.1} parent=1 // pred_check
      _
    $region31: #{forward.1} parent=1 // pred_check_branch
      %694 = sbr.rel (0) target = $region33
    $region32: #{forward.1} parent=1 // pred_region
      _
    $region33: #{forward.1} parent=1 // pred_fallthru
      _
    %695 = vsyncpa [#allocation3], 1
    %696 = vsyncpa [#allocation5], 1

</llo_original>
